<compile_context>
chip_gen: v7x
topology: tpu7x:2x2x1
jax: 0.10.0
libtpu: 0.0.40
codegen_flags: <defaults>
</compile_context>

<pallas_src>
import jax
import jax.numpy as jnp
from jax.experimental import pallas as pl
from jax.experimental.pallas import tpu as pltpu


def _shift_lanes(x, shift):
    """Circular shift along the last (lane) axis; y[..., j] = x[..., j - shift]."""
    w = x.shape[-1]
    if w % 128 == 0:
        # Lane-aligned: XLU rotate (separate issue slot, overlaps the VALU FMAs).
        return pltpu.roll(x, shift % w, 2)
    # Unaligned last dim (e.g. the 16-wide test case): slice+concat path.
    return jnp.roll(x, shift, axis=2)


def _lamplas_kernel(x_ref, o_ref):
    # x_ref: (TP, H, W) VMEM tile; o_ref: (TP, H-2, W) VMEM tile (lane-dense).
    x = x_ref[...].astype(jnp.float32)
    h = x.shape[1]
    oh = h - 2
    # Horizontal + center taps on the full plane. Wrap-around only pollutes
    # output columns 0 and W-1, which the wrapper discards.
    x_left = _shift_lanes(x, 1)     # x[:, :, j-1]
    x_right = _shift_lanes(x, -1)   # x[:, :, j+1]
    hc = 5.0 * x - x_left - x_right
    # Vertical taps via sublane-axis static slices.
    out = hc[:, 1:1 + oh, :] - x[:, 0:oh, :] - x[:, 2:2 + oh, :]
    o_ref[...] = out.astype(o_ref.dtype)


def lamplas(x, *, vmem_budget_bytes=8 * 1024 * 1024):
    """Pallas TPU implementation of the `lamplas` module forward pass."""
    B, C, H, W = x.shape
    assert C >= 3, "lamplas uses channels 0..2"
    oh, ow = H - 2, W - 2

    xf = x[:, :3].reshape(B * 3, H, W)
    bc = B * 3

    # Planes per grid step: largest divisor of B*3 whose double-buffered
    # input+output tiles fit the VMEM budget; keep >=2 grid steps when
    # possible so the 'parallel' axis can shard across TensorCores (v7x).
    itemsize = jnp.dtype(x.dtype).itemsize
    per_plane = 2 * (H * W + oh * W) * itemsize  # 2 bufs x (in + out) per plane
    candidates = [d for d in range(1, bc + 1)
                  if bc % d == 0 and d * per_plane <= vmem_budget_bytes] or [1]
    multi = [d for d in candidates if bc // d >= 2]
    tp = max(multi) if multi else max(candidates)

    out_full = pl.pallas_call(
        _lamplas_kernel,
        out_shape=jax.ShapeDtypeStruct((bc, oh, W), x.dtype),
        grid=(bc // tp,),
        in_specs=[pl.BlockSpec((tp, H, W), lambda i: (i, 0, 0))],
        out_specs=pl.BlockSpec((tp, oh, W), lambda i: (i, 0, 0)),
        compiler_params=pltpu.CompilerParams(
            dimension_semantics=("parallel",)),
    )(xf)

    # Valid output columns of the full-width kernel result are 1 .. W-2.
    return out_full[:, :, 1:W - 1].reshape(B, 3, oh, ow)


def _reference(x):
    # Pure-JAX reference: per-channel valid cross-correlation with the fixed
    # Laplacian kernel (matches F.conv2d in the PyTorch module).
    w = jnp.array([[0.0, -1.0, 0.0],
                   [-1.0, 5.0, -1.0],
                   [0.0, -1.0, 0.0]], dtype=jnp.float32)
    B, C, H, W = x.shape
    oh, ow = H - 2, W - 2
    xc = x[:, :3].astype(jnp.float32)
    out = jnp.zeros((B, 3, oh, ow), jnp.float32)
    for di in range(3):
        for dj in range(3):
            out = out + w[di, dj] * xc[:, :, di:di + oh, dj:dj + ow]
    return out


if __name__ == "__main__":
    key = jax.random.PRNGKey(0)
    B, C, H, W = 2, 3, 16, 16
    x = jax.random.normal(key, (B, C, H, W), dtype=jnp.float32)

    out = lamplas(x)
    jax.block_until_ready(out)

    ref = _reference(x)
    assert out.shape == (B, 3, H - 2, W - 2), out.shape
    assert jnp.allclose(out, ref, atol=1e-5, rtol=1e-5), "mismatch vs reference"
    print("KERNEL_OK")
</pallas_src>

<mosaic_0001>
module attributes {stable_mosaic.version = 11 : i64} {
  func.func @_lamplas_kernel(%arg0: i32, %arg1: memref<3x16x16xf32, #tpu.memory_space<vmem>>, %arg2: memref<3x14x16xf32, #tpu.memory_space<vmem>>) attributes {dimension_semantics = [#tpu.dimension_semantics<parallel>], iteration_bounds = array<i64: 2>, scalar_prefetch = 0 : i64, scratch_operands = 0 : i64, tpu.core_type = #tpu.core_type<tc>, window_params = [{transform_indices = @transform_0, window_bounds = array<i64: 3, 16, 16>}, {transform_indices = @transform_1, window_bounds = array<i64: 3, 14, 16>}]} {
    %c0 = arith.constant 0 : index
    %c0_0 = arith.constant 0 : index
    %c0_1 = arith.constant 0 : index
    %0 = vector.load %arg1[%c0, %c0_0, %c0_1] : memref<3x16x16xf32, #tpu.memory_space<vmem>>, vector<3x16x16xf32>
    %1 = vector.extract_strided_slice %0 {offsets = [0, 0, 15], sizes = [3, 16, 1], strides = [1, 1, 1]} : vector<3x16x16xf32> to vector<3x16x1xf32>
    %2 = vector.extract_strided_slice %0 {offsets = [0, 0, 0], sizes = [3, 16, 15], strides = [1, 1, 1]} : vector<3x16x16xf32> to vector<3x16x15xf32>
    %3 = tpu.concatenate %1, %2 in 2 : vector<3x16x1xf32>, vector<3x16x15xf32> -> vector<3x16x16xf32>
    %4 = vector.extract_strided_slice %0 {offsets = [0, 0, 1], sizes = [3, 16, 15], strides = [1, 1, 1]} : vector<3x16x16xf32> to vector<3x16x15xf32>
    %5 = vector.extract_strided_slice %0 {offsets = [0, 0, 0], sizes = [3, 16, 1], strides = [1, 1, 1]} : vector<3x16x16xf32> to vector<3x16x1xf32>
    %6 = tpu.concatenate %4, %5 in 2 : vector<3x16x15xf32>, vector<3x16x1xf32> -> vector<3x16x16xf32>
    %cst = arith.constant 5.000000e+00 : f32
    %7 = vector.broadcast %cst : f32 to vector<3x16x16xf32>
    %8 = arith.mulf %7, %0 : vector<3x16x16xf32>
    %9 = arith.subf %8, %3 : vector<3x16x16xf32>
    %10 = arith.subf %9, %6 : vector<3x16x16xf32>
    %11 = vector.extract_strided_slice %10 {offsets = [0, 1, 0], sizes = [3, 14, 16], strides = [1, 1, 1]} : vector<3x16x16xf32> to vector<3x14x16xf32>
    %12 = vector.extract_strided_slice %0 {offsets = [0, 0, 0], sizes = [3, 14, 16], strides = [1, 1, 1]} : vector<3x16x16xf32> to vector<3x14x16xf32>
    %13 = arith.subf %11, %12 : vector<3x14x16xf32>
    %14 = vector.extract_strided_slice %0 {offsets = [0, 2, 0], sizes = [3, 14, 16], strides = [1, 1, 1]} : vector<3x16x16xf32> to vector<3x14x16xf32>
    %15 = arith.subf %13, %14 : vector<3x14x16xf32>
    %c0_2 = arith.constant 0 : index
    %c0_3 = arith.constant 0 : index
    %c0_4 = arith.constant 0 : index
    %16 = vector.load %arg2[%c0_2, %c0_3, %c0_4] : memref<3x14x16xf32, #tpu.memory_space<vmem>>, vector<3x14x16xf32>
    tpu.vector_store %arg2[%c0_2, %c0_3, %c0_4], %15 {strides = array<i32>} : memref<3x14x16xf32, #tpu.memory_space<vmem>>, vector<3x14x16xf32>,
    return
  }
  func.func @transform_0(%arg0: i32) -> (i32, i32, i32) {
    %c0_i32 = arith.constant 0 : i32
    %c0_i32_0 = arith.constant 0 : i32
    %c0_i32_1 = arith.constant 0 : i32
    return %arg0, %c0_i32, %c0_i32_0 : i32, i32, i32
  }
  func.func @transform_1(%arg0: i32) -> (i32, i32, i32) {
    %c0_i32 = arith.constant 0 : i32
    %c0_i32_0 = arith.constant 0 : i32
    %c0_i32_1 = arith.constant 0 : i32
    return %arg0, %c0_i32, %c0_i32_0 : i32, i32, i32
  }
}

</mosaic_0001>

<llo_original>
// kernel: tpu_custom_call.1
$region0: #{tpu_custom_call.1}
  #allocation0 [shape = 'u32[]', space=smem, size = 0x4, offset = 0x4, fixed_abs, tag = 'smem constant byte address 0x4 - core index']
  #allocation1 [shape = 'u32[144,128]{1,0:T(1,128)}', space=vmem, size = 0x12000, scoped, tag = 'internal scratch']
  %s0 = inlined_call_operand.hbm [shape: f32[6,16,16], index: 0, kind: input, shape index: {}]
  %s1 = inlined_call_operand.hbm [shape: f32[6,14,16], index: 1, kind: output, shape index: {}]
  %s2 = sld [smem:[#allocation0]]
  $region41: #{tpu_custom_call.1} parent=0
    _
  %s4 = ssub.s32 1, %s2
  %s5 = scalar_select 0, %s4, %s2
  $region1: #{tpu_custom_call.1} parent=0
    #allocation2 [shape = 'u8[49152]{0}', space=vmem, size = 0xc000, scoped, tag = 'input window, operand 0']
    #allocation3 [shape = 's32[2]{0}', space=sflag, size = 0x8, scoped, tag = 'scoped memory for tpu_custom_call.1']
    #allocation4 [shape = 's32[2]{0}', space=sflag, size = 0x8, scoped, tag = 'scoped memory for tpu_custom_call.1']
    #allocation5 [shape = 'u8[49152]{0}', space=vmem, size = 0xc000, scoped, tag = 'output window, operand 0']
    %6 = vsyncpa [#allocation3], 0
    %s7 = scalar_lea.sflag [#allocation3], 1
    %8 = vsyncpa %s7, 0
    %9 = vsyncpa [#allocation4], 0
    %s10 = scalar_lea.sflag [#allocation4], 1
    %11 = vsyncpa %s10, 0
    loop: start=0, step=1, limit=4
    $region2: #{tpu_custom_call.1} parent=1 // loop_pre_header
      _
    $region3: #{tpu_custom_call.1} parent=1 // loop_header
      %s13 = sphi 0, %s17
      %p14 = scmp.ge.s32.totalorder %s13, 4
      %s23 = sphi 0, %s25
      %s26 = sphi 0, %s23
      %s27 = sphi 0, %s26
      %s43 = sphi 0, %s27
      %s49 = sphi 0, %s51
      %s52 = sphi 0, %s49
      %s53 = sphi 0, %s52
      %s69 = sphi 0, %s53
    $region4: #{tpu_custom_call.1} parent=1 // loop_header_branch
      %16 = sbr.rel (%p14) target = $region8
    $region5: #{tpu_custom_call.1} parent=1 // loop_body
      %s18 = ssub.s32 %s13, 1
      %s19 = ssub.s32 %s13, 2
      %s20 = sadd.s32 %s13, 1
      %s21 = ssub.s32 %s13, %s20
      %p22 = scmp.eq.s32.totalorder %s21, 0
      %s24 = sadd.s32 %s23, 1
      %s25 = scalar_select %p22, %s23, %s24
      %p28 = pneg %p22
      %p29 = scmp.eq.s32.totalorder %s13, 1
      %p30 = por %p28, %p29
      %p31 = scmp.ne.s32.totalorder %s23, %s26
      %p32 = scmp.eq.s32.totalorder %s13, 0
      %p33 = por %p31, %p32
      %p34 = scmp.ne.s32.totalorder %s23, %s26
      %p35 = scmp.eq.s32.totalorder %s18, 1
      %p36 = por %p34, %p35
      %p37 = scmp.ne.s32.totalorder %s26, %s27
      %p38 = scmp.eq.s32.totalorder %s18, 0
      %p39 = por %p37, %p38
      %p40 = scmp.ne.s32.totalorder %s26, %s27
      %p41 = scmp.eq.s32.totalorder %s19, 1
      %p42 = por %p40, %p41
      %p44 = scmp.ne.s32.totalorder %s27, %s43
      %p45 = scmp.eq.s32.totalorder %s19, 0
      %p46 = por %p44, %p45
      %s47 = ssub.s32 %s13, %s20
      %p48 = scmp.eq.s32.totalorder %s47, 0
      %s50 = sadd.s32 %s49, 1
      %s51 = scalar_select %p48, %s49, %s50
      %p54 = pneg %p48
      %p55 = scmp.eq.s32.totalorder %s13, 1
      %p56 = por %p54, %p55
      %p57 = scmp.ne.s32.totalorder %s49, %s52
      %p58 = scmp.eq.s32.totalorder %s13, 0
      %p59 = por %p57, %p58
      %p60 = scmp.ne.s32.totalorder %s49, %s52
      %p61 = scmp.eq.s32.totalorder %s18, 1
      %p62 = por %p60, %p61
      %p63 = scmp.ne.s32.totalorder %s52, %s53
      %p64 = scmp.eq.s32.totalorder %s18, 0
      %p65 = por %p63, %p64
      %p66 = scmp.ne.s32.totalorder %s52, %s53
      %p67 = scmp.eq.s32.totalorder %s19, 1
      %p68 = por %p66, %p67
      %p70 = scmp.ne.s32.totalorder %s53, %s69
      %p71 = scmp.eq.s32.totalorder %s19, 0
      %p72 = por %p70, %p71
      %p73 = scmp.le.s32.totalorder 1, %s13
      %p74 = scmp.lt.s32.totalorder %s13, 3
      %p75 = pnand %p73, %p74
      %p76 = pneg %p75
      // Predicated region
      $region9: #{tpu_custom_call.1} parent=5 // pred_check
        _
      $region10: #{tpu_custom_call.1} parent=5 // pred_check_branch
        %78 = sbr.rel (%p75) target = $region12
      $region11: #{tpu_custom_call.1} parent=5 // pred_region
        %s79 = ssub.s32 %s13, 1
      $region12: #{tpu_custom_call.1} parent=5 // pred_fallthru
        _
      %p80 = scmp.lt.s32.totalorder %s13, 2
      // Predicated region
      $region13: #{tpu_custom_call.1} parent=5 // pred_check
        %p81 = pneg %p80
      $region14: #{tpu_custom_call.1} parent=5 // pred_check_branch
        %83 = sbr.rel (%p81) target = $region16
      $region15: #{tpu_custom_call.1} parent=5 // pred_region
        // Predicated region
        $region17: #{tpu_custom_call.1} parent=15 // pred_check
          %p84 = pneg %p33
        $region18: #{tpu_custom_call.1} parent=15 // pred_check_branch
          %86 = sbr.rel (%p84) target = $region20
        $region19: #{tpu_custom_call.1} parent=15 // pred_region
          %s87 = sand.u32 %s23, 1
          %s88 = scalar_lea.sflag [#allocation3], %s87
          %s89 = sand.u32 %s23, 1
          %s90 = smul.addr %s89, 48
          %s91 = scalar_lea.vmem [#allocation2], %s90
          %s92 = smul.u32 3, %s13
          %s94 = ssub.s32 768, 768
          %95 = vsyncadd %s88, %s94
          %s96 = smul.addr %s92, 2
          %s97 = smul.addr %s96, 128
          %s98 = scalar_lea.hbm %s0, %s97
          %s99 = sshll.u32 %s91, 4
          %s100 = int_to_ptr.vmem [resolvable:$true] %s99
          %105 = dma.hbm_to_vmem [thread:$0]  %s98, 768, %s100, %s88, 128, 128, 8
        $region20: #{tpu_custom_call.1} parent=15 // pred_fallthru
          _
      $region16: #{tpu_custom_call.1} parent=5 // pred_fallthru
        _
      %p106 = scmp.le.s32.totalorder 1, %s13
      %p107 = scmp.lt.s32.totalorder %s13, 3
      %p108 = pnand %p106, %p107
      %p109 = pneg %p108
      // Predicated region
      $region21: #{tpu_custom_call.1} parent=5 // pred_check
        _
      $region22: #{tpu_custom_call.1} parent=5 // pred_check_branch
        %111 = sbr.rel (%p108) target = $region24
      $region23: #{tpu_custom_call.1} parent=5 // pred_region
        %s112 = ssub.s32 %s13, 1
        %s113 = sand.u32 %s26, 1
        %s114 = scalar_lea.sflag [#allocation3], %s113
        %s115 = sand.u32 %s26, 1
        %s116 = smul.addr %s115, 48
        %s117 = scalar_lea.vmem [#allocation2], %s116
        // Predicated region
        $region25: #{tpu_custom_call.1} parent=23 // pred_check
          %p118 = pneg %p39
        $region26: #{tpu_custom_call.1} parent=23 // pred_check_branch
          %120 = sbr.rel (%p118) target = $region28
        $region27: #{tpu_custom_call.1} parent=23 // pred_region
          %121 = dma.done %s114, 768
        $region28: #{tpu_custom_call.1} parent=23 // pred_fallthru
          _
        %s122 = sand.u32 %s26, 1
        %s123 = scalar_lea.sflag [#allocation3], %s122
        %s124 = sand.u32 %s26, 1
        %s125 = smul.addr %s124, 48
        %s126 = scalar_lea.vmem [#allocation2], %s125
        %p127 = pneg %p39
        %p128 = pneg %p36
        %p129 = pneg %p65
        %p130 = pneg %p62
        %s131 = sand.u32 %s52, 1
        %s132 = scalar_lea.sflag [#allocation4], %s131
        %s133 = sand.u32 %s52, 1
        %s134 = smul.addr %s133, 48
        %s135 = scalar_lea.vmem [#allocation5], %s134
        %s136 = smul.u32 3, %s18
        %s137 = smul.u32 3, %s18
        %v138 = vld [vmem:[%s117] sm:$0xff]
        %v139 = vld [vmem:[%s117 + $0x8] sm:$0xff]
        %v140 = vld [vmem:[%s117 + $0x10] sm:$0xff]
        %v141 = vld [vmem:[%s117 + $0x18] sm:$0xff]
        %v142 = vld [vmem:[%s117 + $0x20] sm:$0xff]
        %v143 = vld [vmem:[%s117 + $0x28] sm:$0xff]
        %150 = vrot.lane.b32.xlu0 %v138, 113
        %v151 = vpop.permute.xlu0 %150
        %152 = vrot.lane.b32.xlu0 %v139, 113
        %v153 = vpop.permute.xlu0 %152
        %154 = vrot.lane.b32.xlu0 %v140, 113
        %v155 = vpop.permute.xlu0 %154
        %156 = vrot.lane.b32.xlu0 %v141, 113
        %v157 = vpop.permute.xlu0 %156
        %158 = vrot.lane.b32.xlu0 %v142, 113
        %v159 = vpop.permute.xlu0 %158
        %160 = vrot.lane.b32.xlu0 %v143, 113
        %v161 = vpop.permute.xlu0 %160
        %168 = vrot.lane.b32.xlu0 %v138, 1
        %v169 = vpop.permute.xlu0 %168
        %170 = vrot.lane.b32.xlu0 %v139, 1
        %v171 = vpop.permute.xlu0 %170
        %172 = vrot.lane.b32.xlu0 %v140, 1
        %v173 = vpop.permute.xlu0 %172
        %174 = vrot.lane.b32.xlu0 %v141, 1
        %v175 = vpop.permute.xlu0 %174
        %176 = vrot.lane.b32.xlu0 %v142, 1
        %v177 = vpop.permute.xlu0 %176
        %178 = vrot.lane.b32.xlu0 %v143, 1
        %v179 = vpop.permute.xlu0 %178
        %vm186 = vcmask 7168
        %v187 = vsel %vm186, %v151, %v169
        %v188 = vsel %vm186, %v153, %v171
        %v189 = vsel %vm186, %v155, %v173
        %v190 = vsel %vm186, %v157, %v175
        %v191 = vsel %vm186, %v159, %v177
        %v192 = vsel %vm186, %v161, %v179
        %193 = vrot.lane.b32.xlu0 %v138, 127
        %v194 = vpop.permute.xlu0 %193
        %195 = vrot.lane.b32.xlu0 %v139, 127
        %v196 = vpop.permute.xlu0 %195
        %197 = vrot.lane.b32.xlu0 %v140, 127
        %v198 = vpop.permute.xlu0 %197
        %199 = vrot.lane.b32.xlu0 %v141, 127
        %v200 = vpop.permute.xlu0 %199
        %201 = vrot.lane.b32.xlu0 %v142, 127
        %v202 = vpop.permute.xlu0 %201
        %203 = vrot.lane.b32.xlu0 %v143, 127
        %v204 = vpop.permute.xlu0 %203
        %211 = vrot.lane.b32.xlu0 %v138, 15
        %v212 = vpop.permute.xlu0 %211
        %213 = vrot.lane.b32.xlu0 %v139, 15
        %v214 = vpop.permute.xlu0 %213
        %215 = vrot.lane.b32.xlu0 %v140, 15
        %v216 = vpop.permute.xlu0 %215
        %217 = vrot.lane.b32.xlu0 %v141, 15
        %v218 = vpop.permute.xlu0 %217
        %219 = vrot.lane.b32.xlu0 %v142, 15
        %v220 = vpop.permute.xlu0 %219
        %221 = vrot.lane.b32.xlu0 %v143, 15
        %v222 = vpop.permute.xlu0 %221
        %vm229 = vcmask 121856
        %v230 = vsel %vm229, %v194, %v212
        %v231 = vsel %vm229, %v196, %v214
        %v232 = vsel %vm229, %v198, %v216
        %v233 = vsel %vm229, %v200, %v218
        %v234 = vsel %vm229, %v202, %v220
        %v235 = vsel %vm229, %v204, %v222
        %v236 = vmul.f32 %v138, 5.0
        %v237 = vmul.f32 %v139, 5.0
        %v238 = vmul.f32 %v140, 5.0
        %v239 = vmul.f32 %v141, 5.0
        %v240 = vmul.f32 %v142, 5.0
        %v241 = vmul.f32 %v143, 5.0
        %v242 = vsub.f32 %v236, %v187
        %v243 = vsub.f32 %v237, %v188
        %v244 = vsub.f32 %v238, %v189
        %v245 = vsub.f32 %v239, %v190
        %v246 = vsub.f32 %v240, %v191
        %v247 = vsub.f32 %v241, %v192
        %v248 = vsub.f32 %v242, %v230
        %v249 = vsub.f32 %v243, %v231
        %v250 = vsub.f32 %v244, %v232
        %v251 = vsub.f32 %v245, %v233
        %v252 = vsub.f32 %v246, %v234
        %v253 = vsub.f32 %v247, %v235
        %vm254 = vcmask 1040384
        %v255 = vrot.slane %v138, 7
        %v256 = vrot.slane %v139, 7
        %v257 = vsel %vm254, %v255, %v256
        %v258 = vrot.slane %v140, 7
        %v259 = vrot.slane %v141, 7
        %v260 = vsel %vm254, %v258, %v259
        %v261 = vrot.slane %v142, 7
        %v262 = vrot.slane %v143, 7
        %v263 = vsel %vm254, %v261, %v262
        %v270 = vsub.f32 %v248, %v255
        %v271 = vsub.f32 %v249, %v257
        %v272 = vsub.f32 %v250, %v258
        %v273 = vsub.f32 %v251, %v260
        %v274 = vsub.f32 %v252, %v261
        %v275 = vsub.f32 %v253, %v263
        %vm276 = vcmask 1046528
        %v277 = vrot.slane %v138, 1
        %v278 = vrot.slane %v139, 1
        %v279 = vsel %vm276, %v277, %v278
        %v280 = vrot.slane %v140, 1
        %v281 = vrot.slane %v141, 1
        %v282 = vsel %vm276, %v280, %v281
        %v283 = vrot.slane %v142, 1
        %v284 = vrot.slane %v143, 1
        %v285 = vsel %vm276, %v283, %v284
        %v292 = vsub.f32 %v270, %v279
        %v293 = vsub.f32 %v271, %v278
        %v294 = vsub.f32 %v272, %v282
        %v295 = vsub.f32 %v273, %v281
        %v296 = vsub.f32 %v274, %v285
        %v297 = vsub.f32 %v275, %v284
        %vm298 = vcmask 130049
        %299 = vst.msk [vmem:[%s135 - $0x1] sm:$0xfe] %vm298, %v292
        %vm300 = vcmask 129024
        %301 = vst.msk [vmem:[%s135 + $0x7] sm:$0x7f] %vm300, %v293
        %302 = vst.msk [vmem:[%s135 + $0xf] sm:$0xfe] %vm298, %v294
        %303 = vst.msk [vmem:[%s135 + $0x17] sm:$0x7f] %vm300, %v295
        %304 = vst.msk [vmem:[%s135 + $0x1f] sm:$0xfe] %vm298, %v296
        %305 = vst.msk [vmem:[%s135 + $0x27] sm:$0x7f] %vm300, %v297
        %s306 = sand.u32 %s52, 1
        %s307 = scalar_lea.sflag [#allocation4], %s306
        %s308 = sand.u32 %s52, 1
        %s309 = smul.addr %s308, 48
        %s310 = scalar_lea.vmem [#allocation5], %s309
        // Predicated region
        $region29: #{tpu_custom_call.1} parent=23 // pred_check
          %p311 = pneg %p62
        $region30: #{tpu_custom_call.1} parent=23 // pred_check_branch
          %313 = sbr.rel (%p311) target = $region32
        $region31: #{tpu_custom_call.1} parent=23 // pred_region
          %s314 = smul.u32 3, %s18
          %s316 = ssub.s32 768, 768
          %317 = vsyncadd %s307, %s316
          %s318 = smul.addr %s314, 2
          %s319 = smul.addr %s318, 128
          %s320 = scalar_lea.hbm %s1, %s319
          %s321 = sshll.u32 %s310, 4
          %s322 = int_to_ptr.vmem [resolvable:$true] %s321
          %327 = dma.vmem_to_hbm [thread:$0]  %s322, 768, %s320, %s307, 128, 128, 8
        $region32: #{tpu_custom_call.1} parent=23 // pred_fallthru
          _
      $region24: #{tpu_custom_call.1} parent=5 // pred_fallthru
        _
      %p328 = scmp.le.s32.totalorder 2, %s13
      // Predicated region
      $region33: #{tpu_custom_call.1} parent=5 // pred_check
        %p329 = pneg %p328
      $region34: #{tpu_custom_call.1} parent=5 // pred_check_branch
        %331 = sbr.rel (%p329) target = $region36
      $region35: #{tpu_custom_call.1} parent=5 // pred_region
        %s332 = ssub.s32 %s13, 2
        // Predicated region
        $region37: #{tpu_custom_call.1} parent=35 // pred_check
          %p333 = pneg %p68
        $region38: #{tpu_custom_call.1} parent=35 // pred_check_branch
          %335 = sbr.rel (%p333) target = $region40
        $region39: #{tpu_custom_call.1} parent=35 // pred_region
          %s336 = sand.u32 %s53, 1
          %s337 = scalar_lea.sflag [#allocation4], %s336
          %s338 = sand.u32 %s53, 1
          %s339 = smul.addr %s338, 48
          %s340 = scalar_lea.vmem [#allocation5], %s339
          %341 = dma.done %s337, 768
        $region40: #{tpu_custom_call.1} parent=35 // pred_fallthru
          _
      $region36: #{tpu_custom_call.1} parent=5 // pred_fallthru
        _
    $region6: #{tpu_custom_call.1} parent=1 // loop_footer
      %s17 = sadd.s32 1, %s13
    $region7: #{tpu_custom_call.1} parent=1 // loop_footer_branch
      %12 = sbr.rel target = $region3
    $region8: #{tpu_custom_call.1} parent=1 // loop_exit
      _
    %342 = vsyncpa [#allocation3], 1
    %s343 = scalar_lea.sflag [#allocation3], 1
    %344 = vsyncpa %s343, 1
    %345 = vsyncpa [#allocation4], 1
    %s346 = scalar_lea.sflag [#allocation4], 1
    %347 = vsyncpa %s346, 1

</llo_original>
